<compile_context>
chip_gen: v6e
topology: v6e:2x2x1
jax: 0.10.0
libtpu: 0.0.40
codegen_flags: <defaults>
</compile_context>

<pallas_src>
import functools

import jax
import jax.numpy as jnp
from jax import lax
from jax.experimental import pallas as pl
from jax.experimental.pallas import tpu as pltpu


def _moving_avg_s1_kernel(x_ref, o_ref, *, K, pad, L, L_out, Tc):
    """stride == 1 path.  x_ref: (Bb, L, cb), o_ref: (Bb, L_out, cb)."""
    Bb, _, cb = x_ref.shape
    inv_k = 1.0 / K

    def emit_boundary_chunk(t0, tc):
        # Chunk whose windows may reach past either end of x.  All index arithmetic
        # is static, so the replicate padding is assembled in registers (no scratch).
        for b in range(Bb):  # static
            acc = jnp.zeros((tc, cb), jnp.float32)
            for k in range(K):  # static, unrolled
                xs = t0 + k - pad
                xe = xs + tc
                if 0 <= xs and xe <= L:
                    w = x_ref[b, pl.ds(xs, tc), :]
                else:
                    n_front = min(tc, max(0, -xs))
                    n_back = min(tc - n_front, max(0, xe - L))
                    mid = tc - n_front - n_back
                    lo = xs + n_front
                    parts = []
                    if n_front > 0:
                        parts.append(
                            jnp.broadcast_to(x_ref[b, 0:1, :], (n_front, cb)))
                    if mid > 0:
                        parts.append(x_ref[b, pl.ds(lo, mid), :])
                    if n_back > 0:
                        parts.append(
                            jnp.broadcast_to(x_ref[b, L - 1:L, :], (n_back, cb)))
                    w = parts[0] if len(parts) == 1 else jnp.concatenate(parts, axis=0)
                acc = acc + w.astype(jnp.float32)
            o_ref[b, pl.ds(t0, tc), :] = (acc * inv_k).astype(o_ref.dtype)

    n_chunks = -(-L_out // Tc)
    # Interior chunks: full Tc rows and every one of the K window loads lies fully
    # inside [0, L), so they need only direct contiguous loads from x_ref.
    c_lo = min(-(-pad // Tc), n_chunks)
    c_hi = ((L_out - pad - Tc) // Tc + 1) if (L_out - pad - Tc) >= 0 else 0
    c_hi = max(c_lo, min(c_hi, n_chunks))

    for c in range(c_lo):                       # leading boundary chunks (static)
        t0 = c * Tc
        emit_boundary_chunk(t0, min(Tc, L_out - t0))

    if c_hi > c_lo:                             # interior chunks via fori_loop
        def interior(c, carry):
            t0 = pl.multiple_of(c * Tc, 8)
            acc = jnp.zeros((Bb, Tc, cb), jnp.float32)
            for k in range(K):                  # static, unrolled
                acc = acc + x_ref[:, pl.ds(t0 + (k - pad), Tc), :].astype(jnp.float32)
            o_ref[:, pl.ds(t0, Tc), :] = (acc * inv_k).astype(o_ref.dtype)
            return carry
        lax.fori_loop(c_lo, c_hi, interior, 0)

    for c in range(c_hi, n_chunks):             # trailing boundary chunks (static)
        t0 = c * Tc
        emit_boundary_chunk(t0, min(Tc, L_out - t0))


def _moving_avg_strided_kernel(x_ref, o_ref, xp_ref, *, K, stride, pad, L, L_out):
    """General-stride path (rare).  Replicate-padded VMEM scratch + per-row mean.
    x_ref: (Bb, L, cb), o_ref: (Bb, L_out, cb), xp_ref: (Bb, L + 2*pad, cb)."""
    Bb, _, cb = x_ref.shape
    inv_k = 1.0 / K

    for b in range(Bb):  # static
        if pad > 0:
            xp_ref[b, pl.ds(0, pad), :] = jnp.broadcast_to(
                x_ref[b, 0:1, :], (pad, cb))
            xp_ref[b, pl.ds(pad + L, pad), :] = jnp.broadcast_to(
                x_ref[b, L - 1:L, :], (pad, cb))
        xp_ref[b, pl.ds(pad, L), :] = x_ref[b]

    def row(t, carry):
        for b in range(Bb):  # static
            w = xp_ref[b, pl.ds(t * stride, K), :]
            m = jnp.sum(w.astype(jnp.float32), axis=0, keepdims=True) * inv_k
            o_ref[b, pl.ds(t, 1), :] = m.astype(o_ref.dtype)
        return carry

    lax.fori_loop(0, L_out, row, 0)


def _round_up(v, m):
    return -(-v // m) * m


def _vmem_budget():
    """Per-generation VMEM limit + per-step block budget."""
    try:
        cap = int(pltpu.get_tpu_info().vmem_capacity_bytes)
    except Exception:
        cap = 64 * 1024 * 1024  # conservative (v7x-sized) fallback
    vmem_limit = int(cap * 0.70)                       # ~45 MiB v7x, ~90 MiB v5e/v6e
    vmem_limit = max(32 * 1024 * 1024, min(vmem_limit, 100 * 1024 * 1024))
    block_budget = int(vmem_limit * 0.70)              # headroom for Mosaic scratch
    return vmem_limit, block_budget


def moving_avg(x, kernel_size, stride):
    """x: (B, L, C) -> (B, L_out, C), matching the PyTorch moving_avg module."""
    B, L, C = x.shape
    K = int(kernel_size)
    s = int(stride)
    pad = (K - 1) // 2
    Lp = L + 2 * pad
    L_out = (Lp - K) // s + 1
    if L_out < 1:
        raise ValueError("kernel_size too large for input length")
    dtype = x.dtype
    isz = jnp.dtype(dtype).itemsize

    # Lane-dense channel layout: pad C to a multiple of 128, slice the result back.
    C_pad = _round_up(C, 128)
    if C_pad != C:
        x = jnp.pad(x, ((0, 0), (0, 0), (0, C_pad - C)))

    vmem_limit, budget = _vmem_budget()

    def step_bytes(bb, cbv):
        b = 2 * bb * (L + L_out) * cbv * isz           # double-buffered in + out
        if s != 1:
            b += bb * Lp * cbv * isz                   # padded scratch (strided path)
        return b

    # Channel block: largest multiple-of-128 divisor of C_pad fitting the budget.
    cb_divs = [d for d in range(128, C_pad + 1, 128) if C_pad % d == 0]
    fitting = [d for d in cb_divs if step_bytes(1, d) <= budget]
    cb = max(fitting) if fitting else 128
    n_cb = C_pad // cb

    # Batch block: merge batch elements per step, but keep >=2 grid steps if possible.
    Bb = 1
    for d in sorted((d for d in range(1, B + 1) if B % d == 0), reverse=True):
        if d > 8:
            continue
        if step_bytes(d, cb) > budget:
            continue
        if (B // d) * n_cb < 2 and B * n_cb >= 2:
            continue
        Bb = d
        break
    grid = (B // Bb, n_cb)

    if s == 1:
        # Row-chunk size: keep the (Bb, Tc, cb) f32 accumulator within the vreg file.
        Tc = max(8, min(64, ((16384 // max(1, Bb * cb)) // 8) * 8))
        kernel = functools.partial(
            _moving_avg_s1_kernel, K=K, pad=pad, L=L, L_out=L_out, Tc=Tc)
        scratch = []
    else:
        kernel = functools.partial(
            _moving_avg_strided_kernel, K=K, stride=s, pad=pad, L=L, L_out=L_out)
        scratch = [pltpu.VMEM((Bb, Lp, cb), dtype)]

    out = pl.pallas_call(
        kernel,
        out_shape=jax.ShapeDtypeStruct((B, L_out, C_pad), dtype),
        grid=grid,
        in_specs=[pl.BlockSpec((Bb, L, cb), lambda b, c: (b, 0, c))],
        out_specs=pl.BlockSpec((Bb, L_out, cb), lambda b, c: (b, 0, c)),
        scratch_shapes=scratch,
        compiler_params=pltpu.CompilerParams(
            dimension_semantics=("parallel", "parallel"),
            vmem_limit_bytes=vmem_limit,
        ),
    )(x)
    if C_pad != C:
        out = out[:, :, :C]
    return out


def _reference_moving_avg(x, kernel_size, stride):
    """Pure-JAX reference mirroring the PyTorch module exactly."""
    pad = (kernel_size - 1) // 2
    front = jnp.repeat(x[:, 0:1, :], pad, axis=1)
    end = jnp.repeat(x[:, -1:, :], pad, axis=1)
    xp = jnp.concatenate([front, x, end], axis=1)
    L_out = (xp.shape[1] - kernel_size) // stride + 1
    cols = [jnp.mean(xp[:, t * stride:t * stride + kernel_size, :], axis=1)
            for t in range(L_out)]
    return jnp.stack(cols, axis=1)


if __name__ == "__main__":
    def check(shape, ksize, stride, seed):
        xk = jax.random.normal(jax.random.PRNGKey(seed), shape, dtype=jnp.float32)
        out = jax.block_until_ready(moving_avg(xk, ksize, stride))
        ref = _reference_moving_avg(xk, ksize, stride)
        assert out.shape == ref.shape, (shape, ksize, stride, out.shape, ref.shape)
        assert jnp.allclose(out, ref, atol=1e-5, rtol=1e-5), (shape, ksize, stride)

    # Main case: kernel_size=5, stride=1, x = (batch=2, seq=16, ch=32).
    check((2, 16, 32), 5, 1, 0)
    # Lane-dense channels (multiple of 128), wider window.
    check((1, 24, 128), 7, 1, 1)
    # Large window vs. short sequence, channels not a multiple of 128.
    check((2, 30, 7), 25, 1, 2)
    # stride > 1 path (previously untested).
    check((2, 16, 32), 5, 2, 3)
    # Batched block (Bb=2) + interior fori chunks + trailing partial chunk.
    check((4, 200, 128), 5, 1, 4)

    print("KERNEL_OK")
</pallas_src>

<mosaic_0001>
module attributes {stable_mosaic.version = 11 : i64} {
  func.func @_moving_avg_s1_kernel(%arg0: i32, %arg1: i32, %arg2: memref<1x16x128xf32, #tpu.memory_space<vmem>>, %arg3: memref<1x16x128xf32, #tpu.memory_space<vmem>>) attributes {dimension_semantics = [#tpu.dimension_semantics<parallel>, #tpu.dimension_semantics<parallel>], iteration_bounds = array<i64: 2, 1>, scalar_prefetch = 0 : i64, scratch_operands = 0 : i64, tpu.core_type = #tpu.core_type<tc>, window_params = [{transform_indices = @transform_0, window_bounds = array<i64: 1, 16, 128>}, {transform_indices = @transform_1, window_bounds = array<i64: 1, 16, 128>}]} {
    %cst = arith.constant 0.000000e+00 : f32
    %0 = vector.broadcast %cst : f32 to vector<16x128xf32>
    %c0 = arith.constant 0 : index
    %c0_0 = arith.constant 0 : index
    %c0_1 = arith.constant 0 : index
    %1 = vector.load %arg2[%c0, %c0_0, %c0_1] : memref<1x16x128xf32, #tpu.memory_space<vmem>>, vector<1x1x128xf32>
    %2 = vector.shape_cast %1 : vector<1x1x128xf32> to vector<1x128xf32>
    %3 = vector.shape_cast %2 : vector<1x128xf32> to vector<1x128xf32>
    %4 = vector.broadcast %3 : vector<1x128xf32> to vector<2x128xf32>
    %c0_2 = arith.constant 0 : index
    %c0_3 = arith.constant 0 : index
    %c0_4 = arith.constant 0 : index
    %5 = vector.load %arg2[%c0_2, %c0_3, %c0_4] : memref<1x16x128xf32, #tpu.memory_space<vmem>>, vector<1x14x128xf32>
    %6 = vector.shape_cast %5 : vector<1x14x128xf32> to vector<14x128xf32>
    %7 = tpu.concatenate %4, %6 in 0 : vector<2x128xf32>, vector<14x128xf32> -> vector<16x128xf32>
    %8 = arith.addf %0, %7 : vector<16x128xf32>
    %c0_5 = arith.constant 0 : index
    %c0_6 = arith.constant 0 : index
    %c0_7 = arith.constant 0 : index
    %9 = vector.load %arg2[%c0_5, %c0_6, %c0_7] : memref<1x16x128xf32, #tpu.memory_space<vmem>>, vector<1x1x128xf32>
    %10 = vector.shape_cast %9 : vector<1x1x128xf32> to vector<1x128xf32>
    %c0_8 = arith.constant 0 : index
    %c0_9 = arith.constant 0 : index
    %c0_10 = arith.constant 0 : index
    %11 = vector.load %arg2[%c0_8, %c0_9, %c0_10] : memref<1x16x128xf32, #tpu.memory_space<vmem>>, vector<1x15x128xf32>
    %12 = vector.shape_cast %11 : vector<1x15x128xf32> to vector<15x128xf32>
    %13 = tpu.concatenate %10, %12 in 0 : vector<1x128xf32>, vector<15x128xf32> -> vector<16x128xf32>
    %14 = arith.addf %8, %13 : vector<16x128xf32>
    %c0_11 = arith.constant 0 : index
    %c0_12 = arith.constant 0 : index
    %c0_13 = arith.constant 0 : index
    %15 = vector.load %arg2[%c0_11, %c0_12, %c0_13] : memref<1x16x128xf32, #tpu.memory_space<vmem>>, vector<1x16x128xf32>
    %16 = vector.shape_cast %15 : vector<1x16x128xf32> to vector<16x128xf32>
    %17 = arith.addf %14, %16 : vector<16x128xf32>
    %c0_14 = arith.constant 0 : index
    %c1 = arith.constant 1 : index
    %c0_15 = arith.constant 0 : index
    %18 = vector.load %arg2[%c0_14, %c1, %c0_15] : memref<1x16x128xf32, #tpu.memory_space<vmem>>, vector<1x15x128xf32>
    %19 = vector.shape_cast %18 : vector<1x15x128xf32> to vector<15x128xf32>
    %c0_16 = arith.constant 0 : index
    %c15 = arith.constant 15 : index
    %c0_17 = arith.constant 0 : index
    %20 = vector.load %arg2[%c0_16, %c15, %c0_17] : memref<1x16x128xf32, #tpu.memory_space<vmem>>, vector<1x1x128xf32>
    %21 = vector.shape_cast %20 : vector<1x1x128xf32> to vector<1x128xf32>
    %22 = tpu.concatenate %19, %21 in 0 : vector<15x128xf32>, vector<1x128xf32> -> vector<16x128xf32>
    %23 = arith.addf %17, %22 : vector<16x128xf32>
    %c0_18 = arith.constant 0 : index
    %c2 = arith.constant 2 : index
    %c0_19 = arith.constant 0 : index
    %24 = vector.load %arg2[%c0_18, %c2, %c0_19] : memref<1x16x128xf32, #tpu.memory_space<vmem>>, vector<1x14x128xf32>
    %25 = vector.shape_cast %24 : vector<1x14x128xf32> to vector<14x128xf32>
    %c0_20 = arith.constant 0 : index
    %c15_21 = arith.constant 15 : index
    %c0_22 = arith.constant 0 : index
    %26 = vector.load %arg2[%c0_20, %c15_21, %c0_22] : memref<1x16x128xf32, #tpu.memory_space<vmem>>, vector<1x1x128xf32>
    %27 = vector.shape_cast %26 : vector<1x1x128xf32> to vector<1x128xf32>
    %28 = vector.shape_cast %27 : vector<1x128xf32> to vector<1x128xf32>
    %29 = vector.broadcast %28 : vector<1x128xf32> to vector<2x128xf32>
    %30 = tpu.concatenate %25, %29 in 0 : vector<14x128xf32>, vector<2x128xf32> -> vector<16x128xf32>
    %31 = arith.addf %23, %30 : vector<16x128xf32>
    %cst_23 = arith.constant 2.000000e-01 : f32
    %32 = vector.broadcast %cst_23 : f32 to vector<16x128xf32>
    %33 = arith.mulf %31, %32 : vector<16x128xf32>
    %c0_24 = arith.constant 0 : index
    %c0_25 = arith.constant 0 : index
    %c0_26 = arith.constant 0 : index
    %34 = vector.load %arg3[%c0_24, %c0_25, %c0_26] : memref<1x16x128xf32, #tpu.memory_space<vmem>>, vector<1x16x128xf32>
    %35 = vector.shape_cast %34 : vector<1x16x128xf32> to vector<16x128xf32>
    %36 = vector.shape_cast %33 : vector<16x128xf32> to vector<1x16x128xf32>
    tpu.vector_store %arg3[%c0_24, %c0_25, %c0_26], %36 {strides = array<i32>} : memref<1x16x128xf32, #tpu.memory_space<vmem>>, vector<1x16x128xf32>,
    return
  }
  func.func @transform_0(%arg0: i32, %arg1: i32) -> (i32, i32, i32) {
    %c0_i32 = arith.constant 0 : i32
    %c0_i32_0 = arith.constant 0 : i32
    return %arg0, %c0_i32, %arg1 : i32, i32, i32
  }
  func.func @transform_1(%arg0: i32, %arg1: i32) -> (i32, i32, i32) {
    %c0_i32 = arith.constant 0 : i32
    %c0_i32_0 = arith.constant 0 : i32
    return %arg0, %c0_i32, %arg1 : i32, i32, i32
  }
}

</mosaic_0001>

<llo_original>
// kernel: tpu_custom_call.1
$region0: #{tpu_custom_call.1}
  #allocation0 [shape = 'u32[]', space=smem, size = 0x4, offset = 0x4, fixed_abs, tag = 'smem constant byte address 0x4 - core index']
  #allocation1 [shape = 'u32[144,128]{1,0:T(1,128)}', space=vmem, size = 0x12000, scoped, tag = 'internal scratch']
  %s0 = inlined_call_operand.hbm [shape: f32[2,16,128], index: 0, kind: input, shape index: {}]
  %s1 = inlined_call_operand.hbm [shape: f32[2,16,128], index: 1, kind: output, shape index: {}]
  %s2 = sld [smem:[#allocation0]]
  $region41: #{tpu_custom_call.1} parent=0
    _
  %s4 = ssub.s32 1, %s2
  %s5 = scalar_select 0, %s4, %s2
  $region1: #{tpu_custom_call.1} parent=0
    #allocation2 [shape = 'u8[16384]{0}', space=vmem, size = 0x4000, scoped, tag = 'input window, operand 0']
    #allocation3 [shape = 's32[2]{0}', space=sflag, size = 0x8, scoped, tag = 'scoped memory for tpu_custom_call.1']
    #allocation4 [shape = 's32[2]{0}', space=sflag, size = 0x8, scoped, tag = 'scoped memory for tpu_custom_call.1']
    #allocation5 [shape = 'u8[16384]{0}', space=vmem, size = 0x4000, scoped, tag = 'output window, operand 0']
    %6 = vsyncpa [#allocation3], 0
    %s7 = scalar_lea.sflag [#allocation3], 1
    %8 = vsyncpa %s7, 0
    %9 = vsyncpa [#allocation4], 0
    %s10 = scalar_lea.sflag [#allocation4], 1
    %11 = vsyncpa %s10, 0
    loop: start=0, step=1, limit=4
    $region2: #{tpu_custom_call.1} parent=1 // loop_pre_header
      _
    $region3: #{tpu_custom_call.1} parent=1 // loop_header
      %s13 = sphi 0, %s17
      %p14 = scmp.ge.s32.totalorder %s13, 4
      %s20 = sphi 0, %s32
      %s21 = sphi 0, %s28
      %s22 = sphi 0, %s20
      %s23 = sphi 0, %s21
      %s24 = sphi 0, %s22
      %s25 = sphi 0, %s23
      %s37 = sphi 0, %s39
      %s40 = sphi 0, %s37
      %s41 = sphi 0, %s40
      %s57 = sphi 0, %s41
      %s65 = sphi 0, %s67
      %s68 = sphi 0, %s65
      %s69 = sphi 0, %s68
      %s85 = sphi 0, %s69
    $region4: #{tpu_custom_call.1} parent=1 // loop_header_branch
      %16 = sbr.rel (%p14) target = $region8
    $region5: #{tpu_custom_call.1} parent=1 // loop_body
      %s18 = ssub.s32 %s13, 1
      %s19 = ssub.s32 %s13, 2
      %s26 = sadd.s32 1, %s21
      %p27 = scmp.ge.s32.totalorder %s26, 1
      %s28 = scalar_select %p27, 0, %s26
      %s29 = sadd.s32 1, %s20
      %s30 = scalar_select %p27, %s29, %s20
      %p31 = scmp.ge.s32.totalorder %s30, 2
      %s32 = scalar_select %p31, 0, %s30
      %s33 = ssub.s32 %s20, %s32
      %s34 = ssub.s32 %s21, %s28
      %s35 = sor.u32 %s33, %s34
      %p36 = scmp.eq.s32.totalorder %s35, 0
      %s38 = sadd.s32 %s37, 1
      %s39 = scalar_select %p36, %s37, %s38
      %p42 = pneg %p36
      %p43 = scmp.eq.s32.totalorder %s13, 1
      %p44 = por %p42, %p43
      %p45 = scmp.ne.s32.totalorder %s37, %s40
      %p46 = scmp.eq.s32.totalorder %s13, 0
      %p47 = por %p45, %p46
      %p48 = scmp.ne.s32.totalorder %s37, %s40
      %p49 = scmp.eq.s32.totalorder %s18, 1
      %p50 = por %p48, %p49
      %p51 = scmp.ne.s32.totalorder %s40, %s41
      %p52 = scmp.eq.s32.totalorder %s18, 0
      %p53 = por %p51, %p52
      %p54 = scmp.ne.s32.totalorder %s40, %s41
      %p55 = scmp.eq.s32.totalorder %s19, 1
      %p56 = por %p54, %p55
      %p58 = scmp.ne.s32.totalorder %s41, %s57
      %p59 = scmp.eq.s32.totalorder %s19, 0
      %p60 = por %p58, %p59
      %s61 = ssub.s32 %s20, %s32
      %s62 = ssub.s32 %s21, %s28
      %s63 = sor.u32 %s61, %s62
      %p64 = scmp.eq.s32.totalorder %s63, 0
      %s66 = sadd.s32 %s65, 1
      %s67 = scalar_select %p64, %s65, %s66
      %p70 = pneg %p64
      %p71 = scmp.eq.s32.totalorder %s13, 1
      %p72 = por %p70, %p71
      %p73 = scmp.ne.s32.totalorder %s65, %s68
      %p74 = scmp.eq.s32.totalorder %s13, 0
      %p75 = por %p73, %p74
      %p76 = scmp.ne.s32.totalorder %s65, %s68
      %p77 = scmp.eq.s32.totalorder %s18, 1
      %p78 = por %p76, %p77
      %p79 = scmp.ne.s32.totalorder %s68, %s69
      %p80 = scmp.eq.s32.totalorder %s18, 0
      %p81 = por %p79, %p80
      %p82 = scmp.ne.s32.totalorder %s68, %s69
      %p83 = scmp.eq.s32.totalorder %s19, 1
      %p84 = por %p82, %p83
      %p86 = scmp.ne.s32.totalorder %s69, %s85
      %p87 = scmp.eq.s32.totalorder %s19, 0
      %p88 = por %p86, %p87
      %p89 = scmp.le.s32.totalorder 1, %s13
      %p90 = scmp.lt.s32.totalorder %s13, 3
      %p91 = pnand %p89, %p90
      %p92 = pneg %p91
      // Predicated region
      $region9: #{tpu_custom_call.1} parent=5 // pred_check
        _
      $region10: #{tpu_custom_call.1} parent=5 // pred_check_branch
        %94 = sbr.rel (%p91) target = $region12
      $region11: #{tpu_custom_call.1} parent=5 // pred_region
        %s95 = ssub.s32 %s13, 1
      $region12: #{tpu_custom_call.1} parent=5 // pred_fallthru
        _
      %p96 = scmp.lt.s32.totalorder %s13, 2
      // Predicated region
      $region13: #{tpu_custom_call.1} parent=5 // pred_check
        %p97 = pneg %p96
      $region14: #{tpu_custom_call.1} parent=5 // pred_check_branch
        %99 = sbr.rel (%p97) target = $region16
      $region15: #{tpu_custom_call.1} parent=5 // pred_region
        // Predicated region
        $region17: #{tpu_custom_call.1} parent=15 // pred_check
          %p100 = pneg %p47
        $region18: #{tpu_custom_call.1} parent=15 // pred_check_branch
          %102 = sbr.rel (%p100) target = $region20
        $region19: #{tpu_custom_call.1} parent=15 // pred_region
          %s103 = sand.u32 %s37, 1
          %s104 = scalar_lea.sflag [#allocation3], %s103
          %s105 = sand.u32 %s37, 1
          %s106 = smul.addr %s105, 16
          %s107 = scalar_lea.vmem [#allocation2], %s106
          %s109 = ssub.s32 256, 256
          %110 = vsyncadd %s104, %s109
          %s111 = smul.addr %s20, 2
          %s112 = sadd.s32 %s21, %s111
          %s113 = smul.addr %s112, 128
          %s114 = scalar_lea.hbm %s0, %s113
          %s115 = sshll.u32 %s107, 4
          %s116 = int_to_ptr.vmem [resolvable:$true] %s115
          %121 = dma.hbm_to_vmem [thread:$0]  %s114, 256, %s116, %s104, 128, 128, 8
        $region20: #{tpu_custom_call.1} parent=15 // pred_fallthru
          _
      $region16: #{tpu_custom_call.1} parent=5 // pred_fallthru
        _
      %p122 = scmp.le.s32.totalorder 1, %s13
      %p123 = scmp.lt.s32.totalorder %s13, 3
      %p124 = pnand %p122, %p123
      %p125 = pneg %p124
      // Predicated region
      $region21: #{tpu_custom_call.1} parent=5 // pred_check
        _
      $region22: #{tpu_custom_call.1} parent=5 // pred_check_branch
        %127 = sbr.rel (%p124) target = $region24
      $region23: #{tpu_custom_call.1} parent=5 // pred_region
        %s128 = ssub.s32 %s13, 1
        %s129 = sand.u32 %s40, 1
        %s130 = scalar_lea.sflag [#allocation3], %s129
        %s131 = sand.u32 %s40, 1
        %s132 = smul.addr %s131, 16
        %s133 = scalar_lea.vmem [#allocation2], %s132
        // Predicated region
        $region25: #{tpu_custom_call.1} parent=23 // pred_check
          %p134 = pneg %p53
        $region26: #{tpu_custom_call.1} parent=23 // pred_check_branch
          %136 = sbr.rel (%p134) target = $region28
        $region27: #{tpu_custom_call.1} parent=23 // pred_region
          %137 = dma.done %s130, 256
        $region28: #{tpu_custom_call.1} parent=23 // pred_fallthru
          _
        %s138 = sand.u32 %s40, 1
        %s139 = scalar_lea.sflag [#allocation3], %s138
        %s140 = sand.u32 %s40, 1
        %s141 = smul.addr %s140, 16
        %s142 = scalar_lea.vmem [#allocation2], %s141
        %p143 = pneg %p53
        %p144 = pneg %p50
        %p145 = pneg %p81
        %p146 = pneg %p78
        %s147 = sand.u32 %s68, 1
        %s148 = scalar_lea.sflag [#allocation4], %s147
        %s149 = sand.u32 %s68, 1
        %s150 = smul.addr %s149, 16
        %s151 = scalar_lea.vmem [#allocation5], %s150
        %v152 = vld [vmem:[%s133] sm:$0x1]
        %v153 = vlaneseq
        %v154 = vshrl.u32 %v153, 7
        %v155 = vsub.s32 0, %v154
        %v156 = vrot.slane %v152, %v155
        %v157 = vld [vmem:[%s133] sm:$0xff]
        %v158 = vld [vmem:[%s133 + $0x8] sm:$0x3f]
        %vm161 = vcmask 1041408
        %v162 = vrot.slane %v157, 6
        %v163 = vrot.slane %v158, 6
        %v164 = vsel %vm161, %v162, %v163
        %v167 = vsel %vm161, %v156, %v162
        %v168 = vadd.f32 %v167, 0.0
        %v169 = vadd.f32 %v164, 0.0
        %v170 = vld [vmem:[%s133 + $0x8] sm:$0x7f]
        %vm172 = vcmask 1040384
        %v173 = vrot.slane %v157, 7
        %v174 = vrot.slane %v170, 7
        %v175 = vsel %vm172, %v173, %v174
        %v178 = vsel %vm172, %v152, %v173
        %v179 = vadd.f32 %v168, %v178
        %v180 = vadd.f32 %v169, %v175
        %v181 = vld [vmem:[%s133] sm:$0xff]
        %v182 = vld [vmem:[%s133 + $0x8] sm:$0xff]
        %v183 = vadd.f32 %v179, %v181
        %v184 = vadd.f32 %v180, %v182
        %v185 = vld [vmem:[%s133 + $0x1] sm:$0xff]
        %v186 = vld [vmem:[%s133 + $0x9] sm:$0x7f]
        %v187 = vld [vmem:[%s133 + $0xf] sm:$0x1]
        %v189 = vrot.slane %v187, 1
        %vm191 = vcmask 1046528
        %v192 = vsel %vm191, %v186, %v189
        %v193 = vadd.f32 %v183, %v185
        %v194 = vadd.f32 %v184, %v192
        %v195 = vld [vmem:[%s133 + $0x2] sm:$0xff]
        %v196 = vld [vmem:[%s133 + $0xa] sm:$0x3f]
        %v197 = vlaneseq
        %v198 = vshrl.u32 %v197, 7
        %v199 = vsub.s32 0, %v198
        %v200 = vrot.slane %v187, %v199
        %vm201 = vcmask 1045504
        %v202 = vsel %vm201, %v196, %v200
        %v203 = vadd.f32 %v193, %v195
        %v204 = vadd.f32 %v194, %v202
        %v205 = vmul.f32 %v203, 0.2
        %v206 = vmul.f32 %v204, 0.2
        %207 = vst [vmem:[%s151] sm:$0xff] %v205
        %208 = vst [vmem:[%s151 + $0x8] sm:$0xff] %v206
        %s209 = sand.u32 %s68, 1
        %s210 = scalar_lea.sflag [#allocation4], %s209
        %s211 = sand.u32 %s68, 1
        %s212 = smul.addr %s211, 16
        %s213 = scalar_lea.vmem [#allocation5], %s212
        // Predicated region
        $region29: #{tpu_custom_call.1} parent=23 // pred_check
          %p214 = pneg %p78
        $region30: #{tpu_custom_call.1} parent=23 // pred_check_branch
          %216 = sbr.rel (%p214) target = $region32
        $region31: #{tpu_custom_call.1} parent=23 // pred_region
          %s218 = ssub.s32 256, 256
          %219 = vsyncadd %s210, %s218
          %s220 = smul.addr %s22, 2
          %s221 = sadd.s32 %s23, %s220
          %s222 = smul.addr %s221, 128
          %s223 = scalar_lea.hbm %s1, %s222
          %s224 = sshll.u32 %s213, 4
          %s225 = int_to_ptr.vmem [resolvable:$true] %s224
          %230 = dma.vmem_to_hbm [thread:$0]  %s225, 256, %s223, %s210, 128, 128, 8
        $region32: #{tpu_custom_call.1} parent=23 // pred_fallthru
          _
      $region24: #{tpu_custom_call.1} parent=5 // pred_fallthru
        _
      %p231 = scmp.le.s32.totalorder 2, %s13
      // Predicated region
      $region33: #{tpu_custom_call.1} parent=5 // pred_check
        %p232 = pneg %p231
      $region34: #{tpu_custom_call.1} parent=5 // pred_check_branch
        %234 = sbr.rel (%p232) target = $region36
      $region35: #{tpu_custom_call.1} parent=5 // pred_region
        %s235 = ssub.s32 %s13, 2
        // Predicated region
        $region37: #{tpu_custom_call.1} parent=35 // pred_check
          %p236 = pneg %p84
        $region38: #{tpu_custom_call.1} parent=35 // pred_check_branch
          %238 = sbr.rel (%p236) target = $region40
        $region39: #{tpu_custom_call.1} parent=35 // pred_region
          %s239 = sand.u32 %s69, 1
          %s240 = scalar_lea.sflag [#allocation4], %s239
          %s241 = sand.u32 %s69, 1
          %s242 = smul.addr %s241, 16
          %s243 = scalar_lea.vmem [#allocation5], %s242
          %244 = dma.done %s240, 256
        $region40: #{tpu_custom_call.1} parent=35 // pred_fallthru
          _
      $region36: #{tpu_custom_call.1} parent=5 // pred_fallthru
        _
    $region6: #{tpu_custom_call.1} parent=1 // loop_footer
      %s17 = sadd.s32 1, %s13
    $region7: #{tpu_custom_call.1} parent=1 // loop_footer_branch
      %12 = sbr.rel target = $region3
    $region8: #{tpu_custom_call.1} parent=1 // loop_exit
      _
    %245 = vsyncpa [#allocation3], 1
    %s246 = scalar_lea.sflag [#allocation3], 1
    %247 = vsyncpa %s246, 1
    %248 = vsyncpa [#allocation4], 1
    %s249 = scalar_lea.sflag [#allocation4], 1
    %250 = vsyncpa %s249, 1

</llo_original>
